<compile_context>
chip_gen: v5e
topology: v5e:2x2
jax: 0.10.0
libtpu: 0.0.40
codegen_flags: <defaults>
</compile_context>

<pallas_src>
import functools
import math

import jax
import jax.numpy as jnp
import numpy as np
from jax import lax
from jax.experimental import pallas as pl
from jax.experimental.pallas import tpu as pltpu

LANES = 128
SUBLANES = 8
TM_MAX = 2048     # rows per grid step -> (2048,128) f32 = 1 MiB per input block
STRIP_MAX = 64    # rows per in-kernel strip (bounds vreg live ranges)


def _round_up(a, b):
    return ((a + b - 1) // b) * b


def _row_align(*dtypes):
    """Sublane row alignment: 8 * (32-bit / dtype-bit) packing factor."""
    a = SUBLANES
    for dt in dtypes:
        a = max(a, SUBLANES * max(1, 4 // max(1, jnp.dtype(dt).itemsize)))
    return a


def _pick_strip(tm, align):
    """Largest multiple of `align` that divides tm and is <= STRIP_MAX."""
    s = min(tm, STRIP_MAX)
    s = max((s // align) * align, align)
    while tm % s != 0:
        s -= align
    return s


def _int_pow(u, k):
    """u**k for small non-negative integer k via multiplies (exact pow(0,0)=1)."""
    if k == 0:
        return jnp.ones_like(u)
    result, base = None, u
    while k:
        if k & 1:
            result = base if result is None else result * base
        k >>= 1
        if k:
            base = base * base
    return result


def _asl_kernel(*, tm, strip, num_tiles, tiles_per_core, rem, needs_mask,
                gamma_neg, gamma_pos, clip, eps, binary_targets):
    """Kernel factory. Every closed-over parameter is a plain Python scalar."""
    log_eps = math.log(eps)
    int_gammas = (binary_targets
                  and float(gamma_neg).is_integer() and float(gamma_pos).is_integer()
                  and 0.0 <= gamma_neg <= 16.0 and 0.0 <= gamma_pos <= 16.0)
    gn_i, gp_i = int(gamma_neg), int(gamma_pos)
    num_strips = tm // strip
    unroll = 2 if num_strips >= 2 else 1

    def loss_strip(xs, ys):
        # xs, ys: (strip, LANES) float32
        e = jnp.exp(-xs)                      # single EUP exp, reused below
        xs_pos = 1.0 / (1.0 + e)              # sigmoid(x)
        xs_neg = 1.0 - xs_pos
        if clip is not None and clip > 0:
            xs_neg = jnp.minimum(xs_neg + clip, 1.0)
        # log(max(sigmoid(x), eps)) == max(-log(1+e), log(eps))   (log monotone)
        log_pos = jnp.maximum(-jnp.log(1.0 + e), log_eps)
        log_neg = jnp.log(jnp.maximum(xs_neg, eps))
        loss = ys * log_pos + (1.0 - ys) * log_neg
        if gamma_neg > 0 or gamma_pos > 0:
            pt = xs_pos * ys + xs_neg * (1.0 - ys)
            u = 1.0 - pt
            if int_gammas:
                # binarized targets: gamma is gamma_pos where y==1 else gamma_neg
                w = jnp.where(ys > 0.5, _int_pow(u, gp_i), _int_pow(u, gn_i))
            else:
                gamma = gamma_pos * ys + gamma_neg * (1.0 - ys)
                w = jnp.power(u, gamma)
            loss = loss * w
        return loss

    def strip_fold(loss):
        # (strip,128) -> (8,128): VPU adds only; the single cross-lane reduce
        # happens once in the wrapper.
        return loss.reshape(strip // SUBLANES, SUBLANES, LANES).sum(axis=0)

    def kernel(x_ref, y_ref, acc_ref):
        c = pl.program_id(0)
        i = pl.program_id(1)

        @pl.when(i == 0)
        def _():
            acc_ref[...] = jnp.zeros_like(acc_ref)

        t = c * tiles_per_core + i            # global row-tile index

        def body(s, acc, *, masked):
            off = pl.multiple_of(s * strip, strip)
            xs = x_ref[pl.ds(off, strip), :].astype(jnp.float32)
            ys = y_ref[pl.ds(off, strip), :].astype(jnp.float32)
            loss = loss_strip(xs, ys)
            if masked:
                row = lax.broadcasted_iota(jnp.int32, (strip, LANES), 0)
                lane = lax.broadcasted_iota(jnp.int32, (strip, LANES), 1)
                lidx = (off + row) * LANES + lane   # element index within this tile
                loss = jnp.where(lidx < rem, loss, 0.0)
            return acc + strip_fold(loss)

        zero = jnp.zeros((SUBLANES, LANES), jnp.float32)

        if needs_mask:
            @pl.when(t < num_tiles - 1)        # full tiles: unmasked fast path
            def _():
                acc_ref[...] += lax.fori_loop(
                    0, num_strips, functools.partial(body, masked=False),
                    zero, unroll=unroll)

            @pl.when(t == num_tiles - 1)       # only the last tile needs masking
            def _():
                acc_ref[...] += lax.fori_loop(
                    0, num_strips, functools.partial(body, masked=True),
                    zero, unroll=unroll)
        else:
            @pl.when(t < num_tiles)            # t >= num_tiles: clamped duplicate, skip
            def _():
                acc_ref[...] += lax.fori_loop(
                    0, num_strips, functools.partial(body, masked=False),
                    zero, unroll=unroll)

    return kernel


def _loss_elems(x, y, gamma_neg, gamma_pos, clip, eps):
    """PyTorch-faithful elementwise loss (pre-negation). Used for the ragged
    tail and the reference."""
    xs_pos = jax.nn.sigmoid(x.astype(jnp.float32))
    yf = y.astype(jnp.float32)
    xs_neg = 1.0 - xs_pos
    if clip is not None and clip > 0:
        xs_neg = jnp.minimum(xs_neg + clip, 1.0)
    los_pos = yf * jnp.log(jnp.maximum(xs_pos, eps))
    los_neg = (1.0 - yf) * jnp.log(jnp.maximum(xs_neg, eps))
    loss = los_pos + los_neg
    if gamma_neg > 0 or gamma_pos > 0:
        pt = xs_pos * yf + xs_neg * (1.0 - yf)
        gamma = gamma_pos * yf + gamma_neg * (1.0 - yf)
        loss = loss * jnp.power(1.0 - pt, gamma)
    return loss


def asymmetric_loss(x, y, gamma_neg=4.0, gamma_pos=1.0, clip=0.05, eps=1e-8,
                    binary_targets=True):
    """AsymmetricLoss.forward: returns the scalar -sum(loss) as f32.

    `binary_targets=True` (the module's documented contract: multi-label
    binarized y) enables the integer-power focal-weight specialization; set
    False for soft labels to keep the generic pow path.
    """
    xf = x.reshape(-1)
    yf = y.reshape(-1)
    n = int(xf.shape[0])

    n_main = (n // LANES) * LANES          # lane-dense prefix handled by the kernel
    total = jnp.float32(0.0)

    if n_main > 0:
        rows = n_main // LANES
        align = _row_align(xf.dtype, yf.dtype)
        tm = min(TM_MAX, _round_up(rows, align))
        strip = _pick_strip(tm, align)
        num_tiles = (rows + tm - 1) // tm
        rem = n_main - (num_tiles - 1) * tm * LANES     # valid elems in last tile
        needs_mask = rem < tm * LANES

        # Leading "parallel" axis: uses both TensorCores on v7x; on 1-TC chips
        # (v5e/v6e) it simply iterates at negligible cost.
        ncores = 2 if num_tiles >= 2 else 1
        tiles_per_core = (num_tiles + ncores - 1) // ncores

        def in_map(c, i):
            # Clamp so the (rare) duplicate trailing iteration never DMAs OOB;
            # its contribution is skipped in-kernel via `t < num_tiles`.
            return (jnp.minimum(c * tiles_per_core + i, num_tiles - 1), 0)

        x2 = (xf if n_main == n else xf[:n_main]).reshape(rows, LANES)  # native dtype
        y2 = (yf if n_main == n else yf[:n_main]).reshape(rows, LANES)  # native dtype

        kernel = _asl_kernel(
            tm=tm, strip=strip, num_tiles=num_tiles, tiles_per_core=tiles_per_core,
            rem=rem, needs_mask=needs_mask,
            gamma_neg=float(gamma_neg), gamma_pos=float(gamma_pos),
            clip=(float(clip) if clip is not None else None), eps=float(eps),
            binary_targets=bool(binary_targets))

        partial = pl.pallas_call(
            kernel,
            out_shape=jax.ShapeDtypeStruct((ncores, SUBLANES, LANES), jnp.float32),
            grid_spec=pltpu.PrefetchScalarGridSpec(
                num_scalar_prefetch=0,
                grid=(ncores, tiles_per_core),
                in_specs=[
                    pl.BlockSpec((tm, LANES), in_map),
                    pl.BlockSpec((tm, LANES), in_map),
                ],
                out_specs=pl.BlockSpec((None, SUBLANES, LANES),
                                       lambda c, i: (c, 0, 0)),
            ),
            compiler_params=pltpu.CompilerParams(
                dimension_semantics=("parallel", "arbitrary"),
            ),
        )(x2, y2)
        total = total + jnp.sum(partial, dtype=jnp.float32)

    if n_main < n:
        # <128-element ragged remainder: plain XLA, no full-array pad copy.
        total = total + jnp.sum(
            _loss_elems(xf[n_main:], yf[n_main:], gamma_neg, gamma_pos, clip, eps))

    # TODO(synk): torch._C.set_grad_enabled around the focal weight is an
    # autograd-only concern; it has no forward-pass / Pallas equivalent.
    return -total


def _reference(x, y, gamma_neg=4.0, gamma_pos=1.0, clip=0.05, eps=1e-8):
    return -jnp.sum(_loss_elems(x, y, gamma_neg, gamma_pos, clip, eps))


if __name__ == "__main__":
    key = jax.random.PRNGKey(0)
    k1, k2 = jax.random.split(key)
    # multi-label logits / binarized targets: batch=2, channels=4, spatial=16x16
    x = jax.random.normal(k1, (2, 4, 16, 16), dtype=jnp.float32)
    y = (jax.random.uniform(k2, (2, 4, 16, 16)) > 0.5).astype(jnp.float32)

    loss = jax.block_until_ready(asymmetric_loss(x, y))
    ref = jax.block_until_ready(_reference(x, y))

    np.testing.assert_allclose(np.asarray(loss), np.asarray(ref),
                               rtol=1e-4, atol=1e-3)
    print("KERNEL_OK")
</pallas_src>

<mosaic_0001>
module attributes {stable_mosaic.version = 11 : i64} {
  func.func @kernel(%arg0: i32, %arg1: i32, %arg2: memref<16x128xf32, #tpu.memory_space<vmem>>, %arg3: memref<16x128xf32, #tpu.memory_space<vmem>>, %arg4: memref<1x8x128xf32, #tpu.memory_space<vmem>>) attributes {dimension_semantics = [#tpu.dimension_semantics<parallel>, #tpu.dimension_semantics<arbitrary>], iteration_bounds = array<i64: 1, 1>, scalar_prefetch = 0 : i64, scratch_operands = 0 : i64, tpu.core_type = #tpu.core_type<tc>, window_params = [{transform_indices = @transform_0, window_bounds = array<i64: 16, 128>}, {transform_indices = @transform_1, window_bounds = array<i64: 16, 128>}, {transform_indices = @transform_2, window_bounds = array<i64: 1, 8, 128>}]} {
    %c0_i32 = arith.constant 0 : i32
    %0 = arith.cmpi eq, %arg1, %c0_i32 : i32
    %1 = arith.extui %0 : i1 to i32
    %c0_i32_0 = arith.constant 0 : i32
    %2 = arith.cmpi ne, %1, %c0_i32_0 : i32
    scf.if %2 {
      %cst_3 = arith.constant 0.000000e+00 : f32
      %9 = vector.broadcast %cst_3 : f32 to vector<8x128xf32>
      %c0 = arith.constant 0 : index
      %c0_4 = arith.constant 0 : index
      %c0_5 = arith.constant 0 : index
      %10 = vector.load %arg4[%c0, %c0_4, %c0_5] : memref<1x8x128xf32, #tpu.memory_space<vmem>>, vector<1x8x128xf32>
      %11 = vector.shape_cast %10 : vector<1x8x128xf32> to vector<8x128xf32>
      %12 = vector.shape_cast %9 : vector<8x128xf32> to vector<1x8x128xf32>
      tpu.vector_store %arg4[%c0, %c0_4, %c0_5], %12 {strides = array<i32>} : memref<1x8x128xf32, #tpu.memory_space<vmem>>, vector<1x8x128xf32>,
    } else {
    }
    %c1_i32 = arith.constant 1 : i32
    %3 = arith.muli %arg0, %c1_i32 : i32
    %4 = arith.addi %3, %arg1 : i32
    %cst = arith.constant 0.000000e+00 : f32
    %5 = vector.broadcast %cst : f32 to vector<8x128xf32>
    %c1_i32_1 = arith.constant 1 : i32
    %6 = arith.cmpi slt, %4, %c1_i32_1 : i32
    %7 = arith.extui %6 : i1 to i32
    %c0_i32_2 = arith.constant 0 : i32
    %8 = arith.cmpi ne, %7, %c0_i32_2 : i32
    scf.if %8 {
      %c0 = arith.constant 0 : index
      %c0_3 = arith.constant 0 : index
      %c0_4 = arith.constant 0 : index
      %9 = vector.load %arg4[%c0, %c0_3, %c0_4] : memref<1x8x128xf32, #tpu.memory_space<vmem>>, vector<1x8x128xf32>
      %10 = vector.shape_cast %9 : vector<1x8x128xf32> to vector<8x128xf32>
      %c0_i32_5 = arith.constant 0 : i32
      %c16_i32 = arith.constant 16 : i32
      %11 = arith.muli %c0_i32_5, %c16_i32 : i32
      %12 = tpu.assume_multiple %11, 16 : i32
      %13 = arith.index_cast %12 : i32 to index
      %c0_6 = arith.constant 0 : index
      %14 = vector.load %arg2[%13, %c0_6] : memref<16x128xf32, #tpu.memory_space<vmem>>, vector<16x128xf32>
      %15 = arith.index_cast %12 : i32 to index
      %c0_7 = arith.constant 0 : index
      %16 = vector.load %arg3[%15, %c0_7] : memref<16x128xf32, #tpu.memory_space<vmem>>, vector<16x128xf32>
      %cst_8 = arith.constant 0.000000e+00 : f32
      %17 = vector.broadcast %cst_8 : f32 to vector<16x128xf32>
      %18 = arith.subf %17, %14 : vector<16x128xf32>
      %19 = math.exp %18 : vector<16x128xf32>
      %cst_9 = arith.constant 1.000000e+00 : f32
      %20 = vector.broadcast %cst_9 : f32 to vector<16x128xf32>
      %21 = arith.addf %20, %19 : vector<16x128xf32>
      %cst_10 = arith.constant 1.000000e+00 : f32
      %22 = vector.broadcast %cst_10 : f32 to vector<16x128xf32>
      %23 = arith.divf %22, %21 : vector<16x128xf32>
      %cst_11 = arith.constant 1.000000e+00 : f32
      %24 = vector.broadcast %cst_11 : f32 to vector<16x128xf32>
      %25 = arith.subf %24, %23 : vector<16x128xf32>
      %cst_12 = arith.constant 5.000000e-02 : f32
      %26 = vector.broadcast %cst_12 : f32 to vector<16x128xf32>
      %27 = arith.addf %25, %26 : vector<16x128xf32>
      %cst_13 = arith.constant 1.000000e+00 : f32
      %28 = vector.broadcast %cst_13 : f32 to vector<16x128xf32>
      %29 = arith.minimumf %27, %28 : vector<16x128xf32>
      %cst_14 = arith.constant 1.000000e+00 : f32
      %30 = vector.broadcast %cst_14 : f32 to vector<16x128xf32>
      %31 = arith.addf %30, %19 : vector<16x128xf32>
      %32 = math.log %31 : vector<16x128xf32>
      %cst_15 = arith.constant 0.000000e+00 : f32
      %33 = vector.broadcast %cst_15 : f32 to vector<16x128xf32>
      %34 = arith.subf %33, %32 : vector<16x128xf32>
      %cst_16 = arith.constant -18.420681 : f32
      %35 = vector.broadcast %cst_16 : f32 to vector<16x128xf32>
      %36 = arith.maximumf %34, %35 : vector<16x128xf32>
      %cst_17 = arith.constant 9.99999993E-9 : f32
      %37 = vector.broadcast %cst_17 : f32 to vector<16x128xf32>
      %38 = arith.maximumf %29, %37 : vector<16x128xf32>
      %39 = math.log %38 : vector<16x128xf32>
      %40 = arith.mulf %16, %36 : vector<16x128xf32>
      %cst_18 = arith.constant 1.000000e+00 : f32
      %41 = vector.broadcast %cst_18 : f32 to vector<16x128xf32>
      %42 = arith.subf %41, %16 : vector<16x128xf32>
      %43 = arith.mulf %42, %39 : vector<16x128xf32>
      %44 = arith.addf %40, %43 : vector<16x128xf32>
      %45 = arith.mulf %23, %16 : vector<16x128xf32>
      %cst_19 = arith.constant 1.000000e+00 : f32
      %46 = vector.broadcast %cst_19 : f32 to vector<16x128xf32>
      %47 = arith.subf %46, %16 : vector<16x128xf32>
      %48 = arith.mulf %29, %47 : vector<16x128xf32>
      %49 = arith.addf %45, %48 : vector<16x128xf32>
      %cst_20 = arith.constant 1.000000e+00 : f32
      %50 = vector.broadcast %cst_20 : f32 to vector<16x128xf32>
      %51 = arith.subf %50, %49 : vector<16x128xf32>
      %cst_21 = arith.constant 5.000000e-01 : f32
      %52 = vector.broadcast %cst_21 : f32 to vector<16x128xf32>
      %53 = arith.cmpf ogt, %16, %52 : vector<16x128xf32>
      %54 = arith.mulf %51, %51 : vector<16x128xf32>
      %55 = arith.mulf %54, %54 : vector<16x128xf32>
      %56 = arith.select %53, %51, %55 : vector<16x128xi1>, vector<16x128xf32>
      %57 = arith.mulf %44, %56 : vector<16x128xf32>
      %58 = vector.shape_cast %57 : vector<16x128xf32> to vector<2x8x128xf32>
      %cst_22 = arith.constant dense<0.000000e+00> : vector<8x128xf32>
      %59 = vector.multi_reduction <add>, %58, %cst_22 [0] : vector<2x8x128xf32> to vector<8x128xf32>
      %60 = arith.addf %5, %59 : vector<8x128xf32>
      %c1_i32_23 = arith.constant 1 : i32
      %61 = arith.addf %10, %60 : vector<8x128xf32>
      %c0_24 = arith.constant 0 : index
      %c0_25 = arith.constant 0 : index
      %c0_26 = arith.constant 0 : index
      %62 = vector.load %arg4[%c0_24, %c0_25, %c0_26] : memref<1x8x128xf32, #tpu.memory_space<vmem>>, vector<1x8x128xf32>
      %63 = vector.shape_cast %62 : vector<1x8x128xf32> to vector<8x128xf32>
      %64 = vector.shape_cast %61 : vector<8x128xf32> to vector<1x8x128xf32>
      tpu.vector_store %arg4[%c0_24, %c0_25, %c0_26], %64 {strides = array<i32>} : memref<1x8x128xf32, #tpu.memory_space<vmem>>, vector<1x8x128xf32>,
    } else {
    }
    return
  }
  func.func @transform_0(%arg0: i32, %arg1: i32) -> (i32, i32) {
    %c1_i32 = arith.constant 1 : i32
    %0 = arith.muli %arg0, %c1_i32 : i32
    %1 = arith.addi %0, %arg1 : i32
    %c0_i32 = arith.constant 0 : i32
    %2 = arith.minsi %1, %c0_i32 : i32
    %c0_i32_0 = arith.constant 0 : i32
    %c0_i32_1 = arith.constant 0 : i32
    return %2, %c0_i32_0 : i32, i32
  }
  func.func @transform_1(%arg0: i32, %arg1: i32) -> (i32, i32) {
    %c1_i32 = arith.constant 1 : i32
    %0 = arith.muli %arg0, %c1_i32 : i32
    %1 = arith.addi %0, %arg1 : i32
    %c0_i32 = arith.constant 0 : i32
    %2 = arith.minsi %1, %c0_i32 : i32
    %c0_i32_0 = arith.constant 0 : i32
    %c0_i32_1 = arith.constant 0 : i32
    return %2, %c0_i32_0 : i32, i32
  }
  func.func @transform_2(%arg0: i32, %arg1: i32) -> (i32, i32, i32) {
    %c0_i32 = arith.constant 0 : i32
    %c0_i32_0 = arith.constant 0 : i32
    %c0_i32_1 = arith.constant 0 : i32
    return %arg0, %c0_i32, %c0_i32_0 : i32, i32, i32
  }
}

</mosaic_0001>

<llo_original>
// kernel: tpu_custom_call.1
$region0: #{tpu_custom_call.1}
  #allocation0 [shape = 'u32[]', space=smem, size = 0x4, offset = 0x4, fixed_abs, tag = 'smem constant byte address 0x4 - core index']
  #allocation1 [shape = 'u32[72,128]{1,0:T(1,128)}', space=vmem, size = 0x9000, scoped, tag = 'internal scratch']
  %s0 = inlined_call_operand.hbm [shape: f32[16,128], index: 0, kind: input, shape index: {}]
  %s1 = inlined_call_operand.hbm [shape: f32[16,128], index: 1, kind: input, shape index: {}]
  %s2 = inlined_call_operand.hbm [shape: f32[1,8,128], index: 2, kind: output, shape index: {}]
  %s3 = sld [smem:[#allocation0]]
  $region34: #{tpu_custom_call.1} parent=0
    _
  %s5 = ssub.s32 1, %s3
  %s6 = scalar_select 0, %s5, %s3
  $region1: #{tpu_custom_call.1} parent=0
    #allocation2 [shape = 'u8[8192]{0}', space=vmem, size = 0x2000, scoped, tag = 'input window, operand 0, single buffered']
    #allocation3 [shape = 's32[1]{0}', space=sflag, size = 0x4, scoped, tag = 'scoped memory for tpu_custom_call.1']
    #allocation4 [shape = 's32[1]{0}', space=sflag, size = 0x4, scoped, tag = 'scoped memory for tpu_custom_call.1']
    #allocation5 [shape = 'u8[8192]{0}', space=vmem, size = 0x2000, scoped, tag = 'input window, operand 1, single buffered']
    #allocation6 [shape = 's32[1]{0}', space=sflag, size = 0x4, scoped, tag = 'scoped memory for tpu_custom_call.1']
    #allocation7 [shape = 'u8[4096]{0}', space=vmem, size = 0x1000, scoped, tag = 'output window, operand 0, single buffered']
    %7 = vsyncpa [#allocation3], 0
    %8 = vsyncpa [#allocation6], 0
    %9 = vsyncpa [#allocation4], 0
    // Predicated region
    $region2: #{tpu_custom_call.1} parent=1 // pred_check
      _
    $region3: #{tpu_custom_call.1} parent=1 // pred_check_branch
      %11 = sbr.rel (0) target = $region5
    $region4: #{tpu_custom_call.1} parent=1 // pred_region
      %s12 = sadd.s32 0, 0
      %p13 = scmp.lt.s32.totalorder %s12, 0
      %s14 = scalar_select %p13, %s12, 0
      %s15 = smul.u32 2, %s14
      %17 = vsyncadd [#allocation3], 0
      %s18 = smul.addr %s15, 8
      %s19 = scalar_lea.hbm %s0, %s18
      %s20 = sshll.u32 %s19, 4
      %s21 = int_to_ptr.hbm [resolvable:$true] %s20
      %s22 = sshll.u32 [#allocation2], 4
      %s23 = int_to_ptr.vmem [resolvable:$true] %s22
      %28 = dma.hbm_to_vmem [thread:$0]  %s21, 256, %s23, [#allocation3], 128, 128, 8
    $region5: #{tpu_custom_call.1} parent=1 // pred_fallthru
      _
    // Predicated region
    $region6: #{tpu_custom_call.1} parent=1 // pred_check
      _
    $region7: #{tpu_custom_call.1} parent=1 // pred_check_branch
      %30 = sbr.rel (0) target = $region9
    $region8: #{tpu_custom_call.1} parent=1 // pred_region
      %s31 = sadd.s32 0, 0
      %p32 = scmp.lt.s32.totalorder %s31, 0
      %s33 = scalar_select %p32, %s31, 0
      %s34 = smul.u32 2, %s33
      %36 = vsyncadd [#allocation6], 0
      %s37 = smul.addr %s34, 8
      %s38 = scalar_lea.hbm %s1, %s37
      %s39 = sshll.u32 %s38, 4
      %s40 = int_to_ptr.hbm [resolvable:$true] %s39
      %s41 = sshll.u32 [#allocation5], 4
      %s42 = int_to_ptr.vmem [resolvable:$true] %s41
      %47 = dma.hbm_to_vmem [thread:$0]  %s40, 256, %s42, [#allocation6], 128, 128, 8
    $region9: #{tpu_custom_call.1} parent=1 // pred_fallthru
      _
    // Predicated region
    $region10: #{tpu_custom_call.1} parent=1 // pred_check
      _
    $region11: #{tpu_custom_call.1} parent=1 // pred_check_branch
      %49 = sbr.rel (0) target = $region13
    $region12: #{tpu_custom_call.1} parent=1 // pred_region
      %51 = dma.done [#allocation3], 256
    $region13: #{tpu_custom_call.1} parent=1 // pred_fallthru
      _
    // Predicated region
    $region14: #{tpu_custom_call.1} parent=1 // pred_check
      _
    $region15: #{tpu_custom_call.1} parent=1 // pred_check_branch
      %53 = sbr.rel (0) target = $region17
    $region16: #{tpu_custom_call.1} parent=1 // pred_region
      %55 = dma.done [#allocation6], 256
    $region17: #{tpu_custom_call.1} parent=1 // pred_fallthru
      _
    %s56 = sadd.s32 0, 0
    %p57 = scmp.lt.s32.totalorder %s56, 0
    %s58 = scalar_select %p57, %s56, 0
    %s59 = smul.u32 2, %s58
    %s60 = sadd.s32 0, 0
    %p61 = scmp.lt.s32.totalorder %s60, 0
    %s62 = scalar_select %p61, %s60, 0
    %s63 = smul.u32 2, %s62
    %p64 = scmp.eq.s32.totalorder 0, 0
    // Predicated region
    $region18: #{tpu_custom_call.1} parent=1 // pred_check
      %p65 = pneg %p64
    $region19: #{tpu_custom_call.1} parent=1 // pred_check_branch
      %67 = sbr.rel (%p65) target = $region21
    $region20: #{tpu_custom_call.1} parent=1 // pred_region
      %68 = vst [vmem:[#allocation7] sm:$0xff] 0.0
    $region21: #{tpu_custom_call.1} parent=1 // pred_fallthru
      _
    %s69 = sadd.s32 0, 0
    %p70 = scmp.lt.s32.totalorder %s69, 1
    // Predicated region
    $region22: #{tpu_custom_call.1} parent=1 // pred_check
      %p71 = pneg %p70
    $region23: #{tpu_custom_call.1} parent=1 // pred_check_branch
      %73 = sbr.rel (%p71) target = $region25
    $region24: #{tpu_custom_call.1} parent=1 // pred_region
      %v74 = vld [vmem:[#allocation7] sm:$0xff]
      %v75 = vld [vmem:[#allocation2] sm:$0xff]
      %v76 = vld [vmem:[#allocation2 + $0x8] sm:$0xff]
      %v77 = vld [vmem:[#allocation5] sm:$0xff]
      %v78 = vld [vmem:[#allocation5 + $0x8] sm:$0xff]
      %v79 = vsub.f32 0.0, %v75
      %v80 = vsub.f32 0.0, %v76
      %v81 = vmul.f32 %v79, 1.442695
      %v82 = vpow.pop %v81
      %v83 = vmul.f32 %v80, 1.442695
      %v84 = vpow.pop %v83
      %v85 = vadd.f32 %v82, 1.0
      %v86 = vadd.f32 %v84, 1.0
      %v87 = vrcp.pop %v85
      %v88 = vmul.f32 %v85, %v87
      %v89 = vsub.f32 1.0, %v88
      %v90 = vmul.f32 %v87, %v89
      %v91 = vadd.f32 %v87, %v90
      %vm92 = vweird.f32 %v85
      %vm93 = vweird.f32 %v87
      %vm94 = vmor %vm92, %vm93
      %v95 = vsel %vm94, %v87, %v91
      %v96 = vand.u32 2147483647, %v85
      %vm97 = vcmp.eq.f32.partialorder %v96, 8.507059e+37
      %v98 = vand.u32 %v85, 2147483648
      %v99 = vor.u32 1.1754944e-38, %v98
      %v100 = vsel %vm97, %v99, %v95
      %v101 = vmul.f32 1.0, %v100
      %v102 = vrcp.pop %v86
      %v103 = vmul.f32 %v86, %v102
      %v104 = vsub.f32 1.0, %v103
      %v105 = vmul.f32 %v102, %v104
      %v106 = vadd.f32 %v102, %v105
      %vm107 = vweird.f32 %v86
      %vm108 = vweird.f32 %v102
      %vm109 = vmor %vm107, %vm108
      %v110 = vsel %vm109, %v102, %v106
      %v111 = vand.u32 2147483647, %v86
      %vm112 = vcmp.eq.f32.partialorder %v111, 8.507059e+37
      %v113 = vand.u32 %v86, 2147483648
      %v114 = vor.u32 1.1754944e-38, %v113
      %v115 = vsel %vm112, %v114, %v110
      %v116 = vmul.f32 1.0, %v115
      %v117 = vsub.f32 1.0, %v101
      %v118 = vsub.f32 1.0, %v116
      %v119 = vadd.f32 %v117, 0.05
      %v120 = vadd.f32 %v118, 0.05
      %v121 = vmin.f32 %v119, 1.0
      %v122 = vmin.f32 %v120, 1.0
      %v123 = vlog2.pop %v85
      %v124 = vmul.f32 %v123, 0.6931472
      %v125 = vlog2.pop %v86
      %v126 = vmul.f32 %v125, 0.6931472
      %v127 = vsub.f32 0.0, %v124
      %v128 = vsub.f32 0.0, %v126
      %v129 = vmax.f32 %v127, -18.420681
      %v130 = vmax.f32 %v128, -18.420681
      %v131 = vmax.f32 %v121, 1e-08
      %v132 = vmax.f32 %v122, 1e-08
      %v133 = vlog2.pop %v131
      %v134 = vmul.f32 %v133, 0.6931472
      %v135 = vlog2.pop %v132
      %v136 = vmul.f32 %v135, 0.6931472
      %v137 = vmul.f32 %v77, %v129
      %v138 = vmul.f32 %v78, %v130
      %v139 = vsub.f32 1.0, %v77
      %v140 = vsub.f32 1.0, %v78
      %v141 = vmul.f32 %v139, %v134
      %v142 = vmul.f32 %v140, %v136
      %v143 = vadd.f32 %v137, %v141
      %v144 = vadd.f32 %v138, %v142
      %v145 = vmul.f32 %v101, %v77
      %v146 = vmul.f32 %v116, %v78
      %v147 = vmul.f32 %v121, %v139
      %v148 = vmul.f32 %v122, %v140
      %v149 = vadd.f32 %v145, %v147
      %v150 = vadd.f32 %v146, %v148
      %v151 = vsub.f32 1.0, %v149
      %v152 = vsub.f32 1.0, %v150
      %vm153 = vcmp.gt.f32.partialorder %v77, 0.5
      %vm154 = vcmp.gt.f32.partialorder %v78, 0.5
      %v155 = vmul.f32 %v151, %v151
      %v156 = vmul.f32 %v152, %v152
      %v157 = vmul.f32 %v155, %v155
      %v158 = vmul.f32 %v156, %v156
      %v159 = vsel %vm153, %v151, %v157
      %v160 = vsel %vm154, %v152, %v158
      %v161 = vmul.f32 %v143, %v159
      %v162 = vmul.f32 %v144, %v160
      %v163 = vadd.f32 %v161, %v162
      %v164 = vadd.f32 %v163, 0.0
      %v165 = vadd.f32 %v74, %v164
      %166 = vst [vmem:[#allocation7] sm:$0xff] %v165
    $region25: #{tpu_custom_call.1} parent=1 // pred_fallthru
      _
    // Predicated region
    $region26: #{tpu_custom_call.1} parent=1 // pred_check
      _
    $region27: #{tpu_custom_call.1} parent=1 // pred_check_branch
      %168 = sbr.rel (0) target = $region29
    $region28: #{tpu_custom_call.1} parent=1 // pred_region
      %170 = vsyncadd [#allocation4], 0
      %s172 = sshll.u32 [#allocation7], 4
      %s173 = int_to_ptr.vmem [resolvable:$true] %s172
      %s174 = sshll.u32 %s2, 4
      %s175 = int_to_ptr.hbm [resolvable:$true] %s174
      %177 = dma.vmem_to_hbm [thread:$0]  %s173, 128, %s175, [#allocation4]
    $region29: #{tpu_custom_call.1} parent=1 // pred_fallthru
      _
    // Predicated region
    $region30: #{tpu_custom_call.1} parent=1 // pred_check
      _
    $region31: #{tpu_custom_call.1} parent=1 // pred_check_branch
      %179 = sbr.rel (0) target = $region33
    $region32: #{tpu_custom_call.1} parent=1 // pred_region
      %181 = dma.done [#allocation4], 128
    $region33: #{tpu_custom_call.1} parent=1 // pred_fallthru
      _
    %182 = vsyncpa [#allocation3], 1
    %183 = vsyncpa [#allocation6], 1
    %184 = vsyncpa [#allocation4], 1

</llo_original>
